<compile_context>
chip_gen: v7x
topology: tpu7x:2x2x1
jax: 0.10.0
libtpu: 0.0.40
codegen_flags: <defaults>
</compile_context>

<pallas_src>
import functools

import jax
import jax.numpy as jnp
from jax.experimental import pallas as pl
from jax.experimental.pallas import tpu as pltpu


def _triplet_kernel(a_ref, p_ref, n_ref, out_ref, *scratch,
                    margin, batch, dim, block_b, block_d,
                    mask_rows, mask_cols, split_d):
    i = pl.program_id(0)          # batch tile  (parallel)
    d = pl.program_id(1)          # D tile      (arbitrary / reduction, innermost)

    a = a_ref[...].astype(jnp.float32)
    p = p_ref[...].astype(jnp.float32)
    n = n_ref[...].astype(jnp.float32)

    dp = a - p
    dn = a - n
    if mask_cols:
        # Single-row mask (one vreg): the iota is loop-invariant; only the
        # scalar `dim - d*block_d` changes per D tile.  Broadcasts over rows.
        col = jax.lax.broadcasted_iota(jnp.int32, (1, block_d), 1)
        valid = col < (dim - d * block_d)
        dp = jnp.where(valid, dp, 0.0)
        dn = jnp.where(valid, dn, 0.0)

    def _finalize(dpos, dneg):
        losses = jnp.maximum(dpos - dneg + jnp.float32(margin), 0.0)   # (block_b, 1)
        if mask_rows:
            row = jax.lax.broadcasted_iota(jnp.int32, (block_b, 1), 0)
            losses = jnp.where(row < (batch - i * block_b), losses, 0.0)
        partial = jnp.sum(losses)                                      # scalar per batch tile
        # Replicated across the whole (1, 8, 128) tile; wrapper reads [:, 0, 0] only.
        out_ref[...] = jnp.full(out_ref.shape, partial, jnp.float32)

    if not split_d:
        # Whole D row fits in one block: no scratch, one shot per batch tile.
        dpos = jnp.sum(dp * dp, axis=1, keepdims=True)                 # (block_b, 1)
        dneg = jnp.sum(dn * dn, axis=1, keepdims=True)
        _finalize(dpos, dneg)
    else:
        dpos_ref, dneg_ref = scratch

        @pl.when(d == 0)
        def _():
            dpos_ref[...] = jnp.zeros_like(dpos_ref)
            dneg_ref[...] = jnp.zeros_like(dneg_ref)

        dpos_ref[...] += jnp.sum(dp * dp, axis=1, keepdims=True)
        dneg_ref[...] += jnp.sum(dn * dn, axis=1, keepdims=True)

        @pl.when(d == pl.num_programs(1) - 1)
        def _():
            _finalize(dpos_ref[...], dneg_ref[...])


def _round_down(x, m):
    return max(m, (x // m) * m)


def _tpu_hw_info():
    """Best-effort (per-core VMEM bytes, TensorCore count); conservative fallbacks."""
    vmem_bytes = 64 * 1024 * 1024     # smallest per-TC VMEM across v5e/v6e/v7x
    num_cores = 2                     # assume megacore-capable; harmless if single-TC
    try:
        info = pltpu.get_tpu_info()
        cap = getattr(info, "vmem_capacity_bytes", None)
        if cap:
            vmem_bytes = int(cap)
        for attr in ("num_cores", "tensorcores_per_chip", "core_count",
                     "num_tensorcores", "cores_per_chip"):
            v = getattr(info, attr, None)
            if v:
                num_cores = int(v)
                break
    except Exception:
        pass
    return vmem_bytes, num_cores


def _choose_tiles(B, D, itemsize, vmem_bytes, num_cores):
    """Pick (block_b, block_d).

    Per-block bytes scale with the chip's VMEM (~2 MiB floor, ~6 MiB cap) to
    amortize the ~0.35 us/step grid overhead against HBM bandwidth, and the
    batch axis is split into at least `num_cores` tiles (when B allows) so the
    'parallel' grid axis shards across both TensorCores on v7x.
    """
    target = max(2 << 20, min(6 << 20, vmem_bytes // 12))
    sub_mult = max(8, 32 // itemsize)             # sublane multiple: f32->8, bf16->16, i8->32
    # Widest D chunk such that a (4*sub_mult)-row tile still fits the per-block budget.
    max_block_d = _round_down(target // (4 * sub_mult * itemsize), 128)
    block_d = D if D <= max_block_d else max_block_d
    block_b = max(sub_mult, target // (block_d * itemsize))
    if num_cores > 1 and B >= num_cores * sub_mult:
        # Guarantee >= num_cores batch tiles (up to ~2x on v7x; no-op on v5e/v6e).
        block_b = min(block_b, _round_down(-(-B // num_cores), sub_mult))
    if block_b >= B:
        block_b = B                               # full-dim block: no divisibility constraint
    else:
        block_b = _round_down(block_b, sub_mult)
    return block_b, block_d


def triplet_loss(anchor, positive, negative, margin, size_average=True,
                 block_b=None, block_d=None):
    """Pallas TPU implementation of TripletLoss.forward. Returns a scalar.

    Tip: the kernel is HBM-bandwidth bound and accumulates in f32 internally,
    so passing bf16 embeddings halves HBM traffic (~2x faster) at ~1e-2 accuracy.
    """
    B, D = anchor.shape
    itemsize = jnp.dtype(anchor.dtype).itemsize

    vmem_bytes, num_cores = _tpu_hw_info()
    auto_b, auto_d = _choose_tiles(B, D, itemsize, vmem_bytes, num_cores)
    block_b = auto_b if block_b is None else int(block_b)
    block_d = auto_d if block_d is None else int(block_d)

    nb = pl.cdiv(B, block_b)
    nd = pl.cdiv(D, block_d)
    mask_rows = (B % block_b) != 0
    mask_cols = (D % block_d) != 0
    split_d = nd > 1

    kernel = functools.partial(
        _triplet_kernel,
        margin=float(margin), batch=B, dim=D,
        block_b=block_b, block_d=block_d,
        mask_rows=mask_rows, mask_cols=mask_cols, split_d=split_d,
    )

    emb_spec = pl.BlockSpec((block_b, block_d), lambda i, d: (i, d))
    # Lane-dense partials; the per-tile scalar is replicated over the 8x128 tile
    # and the wrapper must read ONLY [:, 0, 0].
    out_spec = pl.BlockSpec((1, 8, 128), lambda i, d: (i, 0, 0))

    scratch_shapes = []
    if split_d:
        scratch_shapes = [pltpu.VMEM((block_b, 1), jnp.float32),
                          pltpu.VMEM((block_b, 1), jnp.float32)]

    # VMEM budget: 3 inputs x 2 pipeline buffers x block bytes, plus output
    # double-buffer / scratch / headroom.  Never clamp below the actual
    # footprint (so user-supplied large tiles still get enough scoped VMEM),
    # and stay well under the smallest physical VMEM (64 MiB/TC on v7x).
    pipeline_bytes = 3 * 2 * block_b * block_d * itemsize
    aux_bytes = 2 * 8 * 128 * 4 + 2 * block_b * 4
    need = pipeline_bytes + aux_bytes + (4 << 20)
    vmem_limit = int(max(need, min(32 << 20, max(vmem_bytes - (8 << 20), 16 << 20))))

    cost = pl.CostEstimate(
        flops=int(6 * B * D),
        transcendentals=0,
        bytes_accessed=int(3 * B * D * itemsize + nb * 8 * 128 * 4),
    )

    partials = pl.pallas_call(
        kernel,
        grid=(nb, nd),
        in_specs=[emb_spec, emb_spec, emb_spec],
        out_specs=out_spec,
        out_shape=jax.ShapeDtypeStruct((nb, 8, 128), jnp.float32),
        scratch_shapes=scratch_shapes,
        compiler_params=pltpu.CompilerParams(
            dimension_semantics=("parallel", "arbitrary"),
            vmem_limit_bytes=vmem_limit,
        ),
        cost_estimate=cost,
    )(anchor, positive, negative)

    # Each tile's partial sum is replicated across its 8x128 block: read one lane.
    total = jnp.sum(partials[:, 0, 0])
    return total / jnp.float32(B) if size_average else total


def triplet_loss_ref(anchor, positive, negative, margin, size_average=True):
    a = anchor.astype(jnp.float32)
    p = positive.astype(jnp.float32)
    n = negative.astype(jnp.float32)
    dp = jnp.sum((a - p) ** 2, axis=1)
    dn = jnp.sum((a - n) ** 2, axis=1)
    losses = jnp.maximum(dp - dn + margin, 0.0)
    return jnp.mean(losses) if size_average else jnp.sum(losses)


if __name__ == "__main__":
    key = jax.random.PRNGKey(0)
    k_a, k_p, k_n = jax.random.split(key, 3)
    margin = 1.0

    # Case 1: module-scale shapes (single tile, no masking), mean and sum paths.
    B, D = 8, 32
    a = jax.random.normal(k_a, (B, D), dtype=jnp.float32)
    p = jax.random.normal(k_p, (B, D), dtype=jnp.float32)
    n = jax.random.normal(k_n, (B, D), dtype=jnp.float32)

    out = jax.block_until_ready(triplet_loss(a, p, n, margin, size_average=True))
    ref = triplet_loss_ref(a, p, n, margin, size_average=True)
    assert jnp.allclose(out, ref, rtol=1e-5, atol=1e-5), (out, ref)

    out_sum = jax.block_until_ready(triplet_loss(a, p, n, margin, size_average=False))
    ref_sum = triplet_loss_ref(a, p, n, margin, size_average=False)
    assert jnp.allclose(out_sum, ref_sum, rtol=1e-5, atol=1e-5), (out_sum, ref_sum)

    # Case 2: forces the tiled path (partial batch tile + D split + row/col masking).
    B2, D2 = 20, 160
    a2 = jax.random.normal(k_a, (B2, D2), dtype=jnp.float32)
    p2 = jax.random.normal(k_p, (B2, D2), dtype=jnp.float32)
    n2 = jax.random.normal(k_n, (B2, D2), dtype=jnp.float32)
    out2 = jax.block_until_ready(
        triplet_loss(a2, p2, n2, margin, size_average=True, block_b=8, block_d=128))
    ref2 = triplet_loss_ref(a2, p2, n2, margin, size_average=True)
    assert jnp.allclose(out2, ref2, rtol=1e-5, atol=1e-5), (out2, ref2)

    # Case 3: bf16 inputs (halved HBM traffic), f32 accumulation inside the kernel.
    a3, p3, n3 = (x.astype(jnp.bfloat16) for x in (a, p, n))
    out3 = jax.block_until_ready(triplet_loss(a3, p3, n3, margin, size_average=True))
    ref3 = triplet_loss_ref(a3, p3, n3, margin, size_average=True)
    assert jnp.allclose(out3, ref3, rtol=1e-2, atol=1e-2), (out3, ref3)

    print("KERNEL_OK")
</pallas_src>

<mosaic_0001>
module attributes {stable_mosaic.version = 11 : i64} {
  func.func @_triplet_kernel(%arg0: i32, %arg1: i32, %arg2: memref<8x32xf32, #tpu.memory_space<vmem>>, %arg3: memref<8x32xf32, #tpu.memory_space<vmem>>, %arg4: memref<8x32xf32, #tpu.memory_space<vmem>>, %arg5: memref<1x8x128xf32, #tpu.memory_space<vmem>>) attributes {dimension_semantics = [#tpu.dimension_semantics<parallel>, #tpu.dimension_semantics<arbitrary>], iteration_bounds = array<i64: 1, 1>, scalar_prefetch = 0 : i64, scratch_operands = 0 : i64, tpu.core_type = #tpu.core_type<tc>, window_params = [{transform_indices = @transform_0, window_bounds = array<i64: 8, 32>}, {transform_indices = @transform_1, window_bounds = array<i64: 8, 32>}, {transform_indices = @transform_2, window_bounds = array<i64: 8, 32>}, {transform_indices = @transform_3, window_bounds = array<i64: 1, 8, 128>}]} {
    %c0 = arith.constant 0 : index
    %c0_0 = arith.constant 0 : index
    %0 = vector.load %arg2[%c0, %c0_0] : memref<8x32xf32, #tpu.memory_space<vmem>>, vector<8x32xf32>
    %c0_1 = arith.constant 0 : index
    %c0_2 = arith.constant 0 : index
    %1 = vector.load %arg3[%c0_1, %c0_2] : memref<8x32xf32, #tpu.memory_space<vmem>>, vector<8x32xf32>
    %c0_3 = arith.constant 0 : index
    %c0_4 = arith.constant 0 : index
    %2 = vector.load %arg4[%c0_3, %c0_4] : memref<8x32xf32, #tpu.memory_space<vmem>>, vector<8x32xf32>
    %3 = arith.subf %0, %1 : vector<8x32xf32>
    %4 = arith.subf %0, %2 : vector<8x32xf32>
    %5 = arith.mulf %3, %3 : vector<8x32xf32>
    %cst = arith.constant dense<0.000000e+00> : vector<8xf32>
    %6 = vector.multi_reduction <add>, %5, %cst [1] : vector<8x32xf32> to vector<8xf32>
    %7 = vector.shape_cast %6 : vector<8xf32> to vector<8x1xf32>
    %8 = arith.mulf %4, %4 : vector<8x32xf32>
    %cst_5 = arith.constant dense<0.000000e+00> : vector<8xf32>
    %9 = vector.multi_reduction <add>, %8, %cst_5 [1] : vector<8x32xf32> to vector<8xf32>
    %10 = vector.shape_cast %9 : vector<8xf32> to vector<8x1xf32>
    %11 = arith.subf %7, %10 : vector<8x1xf32>
    %cst_6 = arith.constant 1.000000e+00 : f32
    %12 = vector.broadcast %cst_6 : f32 to vector<8x1xf32>
    %13 = arith.addf %11, %12 : vector<8x1xf32>
    %cst_7 = arith.constant 0.000000e+00 : f32
    %14 = vector.broadcast %cst_7 : f32 to vector<8x1xf32>
    %15 = arith.maximumf %13, %14 : vector<8x1xf32>
    %16 = vector.shape_cast %15 : vector<8x1xf32> to vector<1x8x1xf32>
    %cst_8 = arith.constant dense<0.000000e+00> : vector<1xf32>
    %17 = vector.multi_reduction <add>, %16, %cst_8 [1, 2] : vector<1x8x1xf32> to vector<1xf32>
    %18 = vector.shape_cast %17 : vector<1xf32> to vector<1x1x1xf32>
    %19 = vector.extract %18[0, 0, 0] : f32 from vector<1x1x1xf32>
    %20 = vector.broadcast %19 : f32 to vector<1x8x128xf32>
    %c0_9 = arith.constant 0 : index
    %c0_10 = arith.constant 0 : index
    %c0_11 = arith.constant 0 : index
    %21 = vector.load %arg5[%c0_9, %c0_10, %c0_11] : memref<1x8x128xf32, #tpu.memory_space<vmem>>, vector<1x8x128xf32>
    tpu.vector_store %arg5[%c0_9, %c0_10, %c0_11], %20 {strides = array<i32>} : memref<1x8x128xf32, #tpu.memory_space<vmem>>, vector<1x8x128xf32>,
    return
  }
  func.func @transform_0(%arg0: i32, %arg1: i32) -> (i32, i32) {
    %c0_i32 = arith.constant 0 : i32
    return %arg0, %arg1 : i32, i32
  }
  func.func @transform_1(%arg0: i32, %arg1: i32) -> (i32, i32) {
    %c0_i32 = arith.constant 0 : i32
    return %arg0, %arg1 : i32, i32
  }
  func.func @transform_2(%arg0: i32, %arg1: i32) -> (i32, i32) {
    %c0_i32 = arith.constant 0 : i32
    return %arg0, %arg1 : i32, i32
  }
  func.func @transform_3(%arg0: i32, %arg1: i32) -> (i32, i32, i32) {
    %c0_i32 = arith.constant 0 : i32
    %c0_i32_0 = arith.constant 0 : i32
    %c0_i32_1 = arith.constant 0 : i32
    return %arg0, %c0_i32, %c0_i32_0 : i32, i32, i32
  }
}

</mosaic_0001>

<llo_original>
// kernel: tpu_custom_call.1
$region0: #{tpu_custom_call.1}
  #allocation0 [shape = 'u32[]', space=smem, size = 0x4, offset = 0x4, fixed_abs, tag = 'smem constant byte address 0x4 - core index']
  #allocation1 [shape = 'u32[144,128]{1,0:T(1,128)}', space=vmem, size = 0x12000, scoped, tag = 'internal scratch']
  %s0 = inlined_call_operand.hbm [shape: f32[8,32], index: 0, kind: input, shape index: {}]
  %s1 = inlined_call_operand.hbm [shape: f32[8,32], index: 1, kind: input, shape index: {}]
  %s2 = inlined_call_operand.hbm [shape: f32[8,32], index: 2, kind: input, shape index: {}]
  %s3 = inlined_call_operand.hbm [shape: f32[1,8,128], index: 3, kind: output, shape index: {}]
  %s4 = sld [smem:[#allocation0]]
  $region34: #{tpu_custom_call.1} parent=0
    _
  %s6 = ssub.s32 1, %s4
  %s7 = scalar_select 0, %s6, %s4
  $region1: #{tpu_custom_call.1} parent=0
    #allocation2 [shape = 'u8[4096]{0}', space=vmem, size = 0x1000, scoped, tag = 'input window, operand 0, single buffered']
    #allocation3 [shape = 's32[1]{0}', space=sflag, size = 0x4, scoped, tag = 'scoped memory for tpu_custom_call.1']
    #allocation4 [shape = 's32[1]{0}', space=sflag, size = 0x4, scoped, tag = 'scoped memory for tpu_custom_call.1']
    #allocation5 [shape = 'u8[4096]{0}', space=vmem, size = 0x1000, scoped, tag = 'input window, operand 1, single buffered']
    #allocation6 [shape = 's32[1]{0}', space=sflag, size = 0x4, scoped, tag = 'scoped memory for tpu_custom_call.1']
    #allocation7 [shape = 'u8[4096]{0}', space=vmem, size = 0x1000, scoped, tag = 'input window, operand 2, single buffered']
    #allocation8 [shape = 'u8[4096]{0}', space=vmem, size = 0x1000, scoped, tag = 'output window, operand 0, single buffered']
    %8 = vsyncpa [#allocation3], 0
    %9 = vsyncpa [#allocation6], 0
    %10 = vsyncpa [#allocation4], 0
    // Predicated region
    $region2: #{tpu_custom_call.1} parent=1 // pred_check
      _
    $region3: #{tpu_custom_call.1} parent=1 // pred_check_branch
      %12 = sbr.rel (0) target = $region5
    $region4: #{tpu_custom_call.1} parent=1 // pred_region
      %s14 = ssub.s32 128, 128
      %15 = vsyncadd [#allocation3], %s14
      %s17 = sshll.u32 [#allocation2], 4
      %s18 = int_to_ptr.vmem [resolvable:$true] %s17
      %20 = dma.hbm_to_vmem [thread:$0]  %s0, 128, %s18, [#allocation3]
    $region5: #{tpu_custom_call.1} parent=1 // pred_fallthru
      _
    // Predicated region
    $region6: #{tpu_custom_call.1} parent=1 // pred_check
      _
    $region7: #{tpu_custom_call.1} parent=1 // pred_check_branch
      %22 = sbr.rel (0) target = $region9
    $region8: #{tpu_custom_call.1} parent=1 // pred_region
      %s24 = ssub.s32 128, 128
      %25 = vsyncadd [#allocation6], %s24
      %s27 = sshll.u32 [#allocation5], 4
      %s28 = int_to_ptr.vmem [resolvable:$true] %s27
      %30 = dma.hbm_to_vmem [thread:$0]  %s1, 128, %s28, [#allocation6]
    $region9: #{tpu_custom_call.1} parent=1 // pred_fallthru
      _
    // Predicated region
    $region10: #{tpu_custom_call.1} parent=1 // pred_check
      _
    $region11: #{tpu_custom_call.1} parent=1 // pred_check_branch
      %32 = sbr.rel (0) target = $region13
    $region12: #{tpu_custom_call.1} parent=1 // pred_region
      %s34 = ssub.s32 128, 128
      %35 = vsyncadd [#allocation6], %s34
      %s37 = sshll.u32 [#allocation7], 4
      %s38 = int_to_ptr.vmem [resolvable:$true] %s37
      %40 = dma.hbm_to_vmem [thread:$0]  %s2, 128, %s38, [#allocation6]
    $region13: #{tpu_custom_call.1} parent=1 // pred_fallthru
      _
    // Predicated region
    $region14: #{tpu_custom_call.1} parent=1 // pred_check
      _
    $region15: #{tpu_custom_call.1} parent=1 // pred_check_branch
      %42 = sbr.rel (0) target = $region17
    $region16: #{tpu_custom_call.1} parent=1 // pred_region
      %43 = dma.done [#allocation3], 128
    $region17: #{tpu_custom_call.1} parent=1 // pred_fallthru
      _
    // Predicated region
    $region18: #{tpu_custom_call.1} parent=1 // pred_check
      _
    $region19: #{tpu_custom_call.1} parent=1 // pred_check_branch
      %45 = sbr.rel (0) target = $region21
    $region20: #{tpu_custom_call.1} parent=1 // pred_region
      %46 = dma.done [#allocation6], 128
    $region21: #{tpu_custom_call.1} parent=1 // pred_fallthru
      _
    // Predicated region
    $region22: #{tpu_custom_call.1} parent=1 // pred_check
      _
    $region23: #{tpu_custom_call.1} parent=1 // pred_check_branch
      %48 = sbr.rel (0) target = $region25
    $region24: #{tpu_custom_call.1} parent=1 // pred_region
      %49 = dma.done [#allocation6], 128
    $region25: #{tpu_custom_call.1} parent=1 // pred_fallthru
      _
    %v50 = vld [vmem:[#allocation2] sm:$0xff]
    %v51 = vld [vmem:[#allocation5] sm:$0xff]
    %v52 = vld [vmem:[#allocation7] sm:$0xff]
    %v53 = vsub.f32 %v50, %v51
    %v54 = vsub.f32 %v50, %v52
    %v55 = vmul.f32 %v53, %v53
    %vm56 = vcmask 261120
    %v57 = vsel %vm56, %v55, 0.0
    %58 = vadd.xlane.f32.xlu0 %v57
    %v59 = vpop.xlane.xlu0 %58
    %v60 = vmul.f32 %v54, %v54
    %v61 = vsel %vm56, %v60, 0.0
    %62 = vadd.xlane.f32.xlu0 %v61
    %v63 = vpop.xlane.xlu0 %62
    %v64 = vsub.f32 %v59, %v63
    %v65 = vadd.f32 %v64, 1.0
    %v66 = vmax.f32 %v65, 0.0
    %vm67 = vcmask 7168
    %v68 = vsel %vm67, %v66, 0.0
    %69 = vadd.xlane.f32.xlu0 %v68
    %v70 = vpop.xlane.xlu0 %69
    %v71 = vrot.slane %v70, 4
    %v72 = vadd.f32 %v70, %v71
    %v73 = vrot.slane %v72, 2
    %v74 = vadd.f32 %v72, %v73
    %v75 = vrot.slane %v74, 1
    %v76 = vadd.f32 %v74, %v75
    %s77 = vtos %v76
    %v78 = vstv %s77
    %79 = vst [vmem:[#allocation8] sm:$0xff] %v78
    // Predicated region
    $region26: #{tpu_custom_call.1} parent=1 // pred_check
      _
    $region27: #{tpu_custom_call.1} parent=1 // pred_check_branch
      %81 = sbr.rel (0) target = $region29
    $region28: #{tpu_custom_call.1} parent=1 // pred_region
      %s83 = ssub.s32 128, 128
      %84 = vsyncadd [#allocation4], %s83
      %s86 = sshll.u32 [#allocation8], 4
      %s87 = int_to_ptr.vmem [resolvable:$true] %s86
      %89 = dma.vmem_to_hbm [thread:$0]  %s87, 128, %s3, [#allocation4]
    $region29: #{tpu_custom_call.1} parent=1 // pred_fallthru
      _
    // Predicated region
    $region30: #{tpu_custom_call.1} parent=1 // pred_check
      _
    $region31: #{tpu_custom_call.1} parent=1 // pred_check_branch
      %91 = sbr.rel (0) target = $region33
    $region32: #{tpu_custom_call.1} parent=1 // pred_region
      %92 = dma.done [#allocation4], 128
    $region33: #{tpu_custom_call.1} parent=1 // pred_fallthru
      _
    %93 = vsyncpa [#allocation3], 1
    %94 = vsyncpa [#allocation6], 1
    %95 = vsyncpa [#allocation4], 1

</llo_original>
